<compile_context>
chip_gen: v7x
topology: tpu7x:2x2x1
jax: 0.10.0
libtpu: 0.0.40
codegen_flags: <defaults>
</compile_context>

<pallas_src>
import functools

import numpy as np
import jax
import jax.numpy as jnp
from jax import lax
from jax.experimental import pallas as pl
from jax.experimental.pallas import tpu as pltpu

# Synthetic instantiation of:
#   ConvFilmBlock(channel_in=4, channel_out=8, kernel_size=3, dilation=2,
#                 pool_size=2, use_film=True, n_f=16)
B = 2
C_IN = 4
C_OUT = 8
H = 16            # time frames  (PyTorch H)
N_F = 16          # frequency bins (PyTorch W == n_f)
KSIZE = 3
DIL = 2
POOL = (2, 2)     # MaxPool2d(pool_size=2); assumes H % 2 == 0 and N_F % 2 == 0
HIDDEN = 16       # FiLM MLP hidden width
EPS = 1e-5        # InstanceNorm2d default eps (affine=False)
PAD = DIL * (KSIZE - 1) // 2   # 'same' padding (odd kernel, stride 1)


def _conv_film_block_kernel(x_col_ref, w_ref, ab_ref, out_ref, *,
                            n_pool, b, ho, wo, c_out, eps):
    # --- Conv2d('same', dilation) + bias for the whole batch: one MXU matmul.
    # Bias is the last row of w_ref (ones column appended to x_col in wrapper).
    y = jnp.dot(x_col_ref[...], w_ref[...],
                preferred_element_type=jnp.float32)       # [n_pool*b*ho*wo, c_out]

    # --- ReLU ---
    y = jnp.maximum(y, 0.0)

    # Rows are ordered (pool-window pos, b*ho, wo); the channel (minor) dim is
    # unchanged, so this reshape only refactors untiled/major dims (no lane repack).
    y = y.reshape(n_pool, b * ho, wo, c_out)

    # --- FiLM: per-(frequency, channel) affine, batch/time invariant.
    # alpha/beta were precomputed + reordered in the wrapper into ab_ref.
    y = y * ab_ref[0][:, None, :, :] + ab_ref[1][:, None, :, :]

    # --- MaxPool2d(pool): both spatial axes at once via the leading axis ---
    y = jnp.max(y, axis=0)                                # [b*ho, wo, c_out]
    y = y.reshape(b, ho, wo, c_out)

    # --- InstanceNorm2d (affine=False): per (batch, channel) stats over space,
    #     single-pass (two independent reductions), rsqrt on the EUP slot.
    m1 = jnp.mean(y, axis=(1, 2), keepdims=True)
    m2 = jnp.mean(y * y, axis=(1, 2), keepdims=True)
    var = m2 - m1 * m1
    out_ref[...] = ((y - m1) * lax.rsqrt(var + eps)).astype(out_ref.dtype)


def _film_alpha_beta(p):
    """Batch-invariant FiLM MLP, hoisted out of the kernel (plain XLA)."""
    # TODO(synk): FilmLayer source is not in the reference snippet; this follows
    # the HPPNet-style FiLM: alpha/beta = Linear(1,hidden)->ReLU->Linear(hidden,C)
    # applied to a normalized pitch buffer of length n_f (the frequency axis).
    pitch = p['pitch']                                         # [n_f, 1]
    ha = jnp.maximum(pitch * p['w1a'] + p['b1a'], 0.0)         # [n_f, hidden]
    alpha = ha @ p['w2a'] + p['b2a']                           # [n_f, C_out]
    hb = jnp.maximum(pitch * p['w1b'] + p['b1b'], 0.0)
    beta = hb @ p['w2b'] + p['b2b']
    return alpha, beta


def conv_film_block(x_nchw, params):
    b, c_in, h, w = x_nchw.shape
    ph, pw = POOL
    ho, wo = h // ph, w // pw
    n_pool = ph * pw
    kk = KSIZE * KSIZE * c_in

    # --- im2col in the wrapper: stack the K*K dilated 'same'-padded taps ----
    x_nhwc = jnp.transpose(x_nchw, (0, 2, 3, 1)).astype(jnp.float32)
    x_pad = jnp.pad(x_nhwc, ((0, 0), (PAD, PAD), (PAD, PAD), (0, 0)))
    cols = [x_pad[:, kh * DIL:kh * DIL + h, kw * DIL:kw * DIL + w, :]
            for kh in range(KSIZE) for kw in range(KSIZE)]
    x_col = jnp.concatenate(cols, axis=-1)                         # [b, h, w, kk]

    # Reorder rows to (pool-window pos, batch, pooled-time, pooled-freq) so the
    # kernel can do both MaxPool axes with a single leading-axis max.
    x_col = x_col.reshape(b, ho, ph, wo, pw, kk)                   # t=(to,tp), f=(fo,fp)
    x_col = jnp.transpose(x_col, (2, 4, 0, 1, 3, 5))               # [ph,pw,b,ho,wo,kk]
    x_col = x_col.reshape(n_pool * b * ho * wo, kk)
    rows = x_col.shape[0]
    # Fold the conv bias into the matmul: ones column on x_col, bias row on w.
    x_col = jnp.concatenate([x_col, jnp.ones((rows, 1), jnp.float32)], axis=-1)

    # conv weight OIHW -> [K*K*C_in, C_out] matching the im2col column order.
    w_col = jnp.transpose(params['w_conv'], (2, 3, 1, 0)).reshape(kk, C_OUT)
    w_aug = jnp.concatenate(
        [w_col.astype(jnp.float32), params['b_conv'].reshape(1, C_OUT)], axis=0)

    # FiLM modulation (batch/time invariant): computed once here, reordered to
    # the kernel's (pool-window pos, pooled-freq, channel) layout, and packed
    # into a single [2, n_pool, wo, C_OUT] side input.
    alpha, beta = _film_alpha_beta(params)                         # [n_f, C_OUT]

    def reorder(m):
        m = m.reshape(wo, pw, C_OUT)          # f = fo*pw + fp
        m = jnp.transpose(m, (1, 0, 2))       # [pw, wo, C_OUT]
        return jnp.tile(m, (ph, 1, 1))        # [ph*pw, wo, C_OUT]; row i -> fp = i % pw

    ab = jnp.stack([reorder(alpha), reorder(beta)], axis=0)        # [2, n_pool, wo, C]

    kernel = functools.partial(
        _conv_film_block_kernel,
        n_pool=n_pool, b=b, ho=ho, wo=wo, c_out=C_OUT, eps=EPS)

    out_nhwc = pl.pallas_call(
        kernel,
        out_shape=jax.ShapeDtypeStruct((b, ho, wo, C_OUT), jnp.float32),
        grid=(1,),
        in_specs=[
            pl.BlockSpec((rows, kk + 1), lambda i: (0, 0)),
            pl.BlockSpec((kk + 1, C_OUT), lambda i: (0, 0)),
            pl.BlockSpec((2, n_pool, wo, C_OUT), lambda i: (0, 0, 0, 0)),
        ],
        out_specs=pl.BlockSpec((b, ho, wo, C_OUT), lambda i: (0, 0, 0, 0)),
        compiler_params=pltpu.CompilerParams(
            dimension_semantics=("arbitrary",)),
    )(x_col, w_aug, ab)

    return jnp.transpose(out_nhwc, (0, 3, 1, 2))   # NHWC(pooled) -> NCHW


def init_params(key):
    ks = jax.random.split(key, 10)

    def rn(k, shape, scale=0.1):
        return scale * jax.random.normal(k, shape, jnp.float32)

    return dict(
        # conv weight stored in PyTorch OIHW layout [C_out, C_in, KH, KW]
        w_conv=rn(ks[0], (C_OUT, C_IN, KSIZE, KSIZE)),
        b_conv=rn(ks[1], (C_OUT,)),
        pitch=(jnp.arange(N_F, dtype=jnp.float32) / N_F).reshape(N_F, 1),
        w1a=rn(ks[2], (1, HIDDEN)), b1a=rn(ks[3], (1, HIDDEN)),
        w2a=rn(ks[4], (HIDDEN, C_OUT)), b2a=rn(ks[5], (1, C_OUT)),
        w1b=rn(ks[6], (1, HIDDEN)), b1b=rn(ks[7], (1, HIDDEN)),
        w2b=rn(ks[8], (HIDDEN, C_OUT)), b2b=rn(ks[9], (1, C_OUT)),
    )


def reference(x_nchw, p):
    """Pure-JAX reference matching the PyTorch forward semantics (NCHW)."""
    y = lax.conv_general_dilated(
        x_nchw, p['w_conv'], window_strides=(1, 1),
        padding=((PAD, PAD), (PAD, PAD)), rhs_dilation=(DIL, DIL),
        dimension_numbers=('NCHW', 'OIHW', 'NCHW'))
    y = y + p['b_conv'].reshape(1, C_OUT, 1, 1)
    y = jnp.maximum(y, 0.0)
    # FiLM
    alpha, beta = _film_alpha_beta(p)                          # [n_f, C_out]
    y = y * alpha.T[None, :, None, :] + beta.T[None, :, None, :]
    # MaxPool2d
    ph, pw = POOL
    bb, c, hh, ww = y.shape
    y = y.reshape(bb, c, hh // ph, ph, ww // pw, pw).max(axis=(3, 5))
    # InstanceNorm2d (affine=False, biased var)
    mean = y.mean(axis=(2, 3), keepdims=True)
    var = ((y - mean) ** 2).mean(axis=(2, 3), keepdims=True)
    return (y - mean) / jnp.sqrt(var + EPS)


if __name__ == "__main__":
    key = jax.random.PRNGKey(0)
    pkey, xkey = jax.random.split(key)
    params = init_params(pkey)
    x = jax.random.normal(xkey, (B, C_IN, H, N_F), jnp.float32)   # NCHW input

    out = jax.block_until_ready(jax.jit(conv_film_block)(x, params))
    ref = jax.block_until_ready(reference(x, params))

    assert out.shape == (B, C_OUT, H // POOL[0], N_F // POOL[1])
    np.testing.assert_allclose(np.asarray(out), np.asarray(ref),
                               atol=2e-4, rtol=2e-4)
    print("KERNEL_OK")
</pallas_src>

<mosaic_0001>
module attributes {stable_mosaic.version = 11 : i64} {
  func.func @_conv_film_block_kernel(%arg0: i32, %arg1: memref<512x37xf32, #tpu.memory_space<vmem>>, %arg2: memref<37x8xf32, #tpu.memory_space<vmem>>, %arg3: memref<2x4x8x8xf32, #tpu.memory_space<vmem>>, %arg4: memref<2x8x8x8xf32, #tpu.memory_space<vmem>>) attributes {dimension_semantics = [#tpu.dimension_semantics<arbitrary>], iteration_bounds = array<i64: 1>, scalar_prefetch = 0 : i64, scratch_operands = 0 : i64, tpu.core_type = #tpu.core_type<tc>, window_params = [{pipeline_mode = #tpu.pipeline_mode<synchronous>, transform_indices = @transform_0, window_bounds = array<i64: 512, 37>}, {pipeline_mode = #tpu.pipeline_mode<synchronous>, transform_indices = @transform_1, window_bounds = array<i64: 37, 8>}, {pipeline_mode = #tpu.pipeline_mode<synchronous>, transform_indices = @transform_2, window_bounds = array<i64: 2, 4, 8, 8>}, {pipeline_mode = #tpu.pipeline_mode<synchronous>, transform_indices = @transform_3, window_bounds = array<i64: 2, 8, 8, 8>}]} {
    %c0 = arith.constant 0 : index
    %c0_0 = arith.constant 0 : index
    %0 = vector.load %arg1[%c0, %c0_0] : memref<512x37xf32, #tpu.memory_space<vmem>>, vector<512x37xf32>
    %c0_1 = arith.constant 0 : index
    %c0_2 = arith.constant 0 : index
    %1 = vector.load %arg2[%c0_1, %c0_2] : memref<37x8xf32, #tpu.memory_space<vmem>>, vector<37x8xf32>
    %cst = arith.constant dense<0.000000e+00> : vector<512x8xf32>
    %2 = tpu.matmul %0, %1, %cst {dimension_numbers = #tpu.dot_dimension_numbers<[1], [0], [0], [1], [0, 0, 1, 1], [], []>} : vector<512x37xf32>, vector<37x8xf32>, vector<512x8xf32> -> vector<512x8xf32>
    %cst_3 = arith.constant 0.000000e+00 : f32
    %3 = vector.broadcast %cst_3 : f32 to vector<512x8xf32>
    %4 = arith.maximumf %2, %3 : vector<512x8xf32>
    %5 = vector.shape_cast %4 : vector<512x8xf32> to vector<4x16x8x8xf32>
    %c0_4 = arith.constant 0 : index
    %c0_5 = arith.constant 0 : index
    %c0_6 = arith.constant 0 : index
    %c0_7 = arith.constant 0 : index
    %6 = vector.load %arg3[%c0_4, %c0_5, %c0_6, %c0_7] : memref<2x4x8x8xf32, #tpu.memory_space<vmem>>, vector<1x4x8x8xf32>
    %7 = vector.shape_cast %6 : vector<1x4x8x8xf32> to vector<4x8x8xf32>
    %8 = vector.shape_cast %7 : vector<4x8x8xf32> to vector<4x1x8x8xf32>
    %9 = vector.broadcast %8 : vector<4x1x8x8xf32> to vector<4x16x8x8xf32>
    %10 = arith.mulf %5, %9 : vector<4x16x8x8xf32>
    %c1 = arith.constant 1 : index
    %c0_8 = arith.constant 0 : index
    %c0_9 = arith.constant 0 : index
    %c0_10 = arith.constant 0 : index
    %11 = vector.load %arg3[%c1, %c0_8, %c0_9, %c0_10] : memref<2x4x8x8xf32, #tpu.memory_space<vmem>>, vector<1x4x8x8xf32>
    %12 = vector.shape_cast %11 : vector<1x4x8x8xf32> to vector<4x8x8xf32>
    %13 = vector.shape_cast %12 : vector<4x8x8xf32> to vector<4x1x8x8xf32>
    %14 = vector.broadcast %13 : vector<4x1x8x8xf32> to vector<4x16x8x8xf32>
    %15 = arith.addf %10, %14 : vector<4x16x8x8xf32>
    %cst_11 = arith.constant dense<0xFF800000> : vector<16x8x8xf32>
    %16 = vector.multi_reduction <maximumf>, %15, %cst_11 [0] : vector<4x16x8x8xf32> to vector<16x8x8xf32>
    %17 = vector.shape_cast %16 : vector<16x8x8xf32> to vector<2x8x8x8xf32>
    %cst_12 = arith.constant dense<0.000000e+00> : vector<2x8xf32>
    %18 = vector.multi_reduction <add>, %17, %cst_12 [1, 2] : vector<2x8x8x8xf32> to vector<2x8xf32>
    %19 = vector.shape_cast %18 : vector<2x8xf32> to vector<2x1x1x8xf32>
    %cst_13 = arith.constant 6.400000e+01 : f32
    %20 = vector.broadcast %cst_13 : f32 to vector<2x1x1x8xf32>
    %21 = arith.divf %19, %20 : vector<2x1x1x8xf32>
    %22 = arith.mulf %17, %17 : vector<2x8x8x8xf32>
    %cst_14 = arith.constant dense<0.000000e+00> : vector<2x8xf32>
    %23 = vector.multi_reduction <add>, %22, %cst_14 [1, 2] : vector<2x8x8x8xf32> to vector<2x8xf32>
    %24 = vector.shape_cast %23 : vector<2x8xf32> to vector<2x1x1x8xf32>
    %cst_15 = arith.constant 6.400000e+01 : f32
    %25 = vector.broadcast %cst_15 : f32 to vector<2x1x1x8xf32>
    %26 = arith.divf %24, %25 : vector<2x1x1x8xf32>
    %27 = arith.mulf %21, %21 : vector<2x1x1x8xf32>
    %28 = arith.subf %26, %27 : vector<2x1x1x8xf32>
    %29 = vector.broadcast %21 : vector<2x1x1x8xf32> to vector<2x8x8x8xf32>
    %30 = arith.subf %17, %29 : vector<2x8x8x8xf32>
    %cst_16 = arith.constant 9.99999974E-6 : f32
    %31 = vector.broadcast %cst_16 : f32 to vector<2x1x1x8xf32>
    %32 = arith.addf %28, %31 : vector<2x1x1x8xf32>
    %33 = math.rsqrt %32 : vector<2x1x1x8xf32>
    %34 = vector.broadcast %33 : vector<2x1x1x8xf32> to vector<2x8x8x8xf32>
    %35 = arith.mulf %30, %34 : vector<2x8x8x8xf32>
    %c0_17 = arith.constant 0 : index
    %c0_18 = arith.constant 0 : index
    %c0_19 = arith.constant 0 : index
    %c0_20 = arith.constant 0 : index
    %36 = vector.load %arg4[%c0_17, %c0_18, %c0_19, %c0_20] : memref<2x8x8x8xf32, #tpu.memory_space<vmem>>, vector<2x8x8x8xf32>
    tpu.vector_store %arg4[%c0_17, %c0_18, %c0_19, %c0_20], %35 {strides = array<i32>} : memref<2x8x8x8xf32, #tpu.memory_space<vmem>>, vector<2x8x8x8xf32>,
    return
  }
  func.func @transform_0(%arg0: i32) -> (i32, i32) {
    %c0_i32 = arith.constant 0 : i32
    %c0_i32_0 = arith.constant 0 : i32
    %c0_i32_1 = arith.constant 0 : i32
    return %c0_i32, %c0_i32_0 : i32, i32
  }
  func.func @transform_1(%arg0: i32) -> (i32, i32) {
    %c0_i32 = arith.constant 0 : i32
    %c0_i32_0 = arith.constant 0 : i32
    %c0_i32_1 = arith.constant 0 : i32
    return %c0_i32, %c0_i32_0 : i32, i32
  }
  func.func @transform_2(%arg0: i32) -> (i32, i32, i32, i32) {
    %c0_i32 = arith.constant 0 : i32
    %c0_i32_0 = arith.constant 0 : i32
    %c0_i32_1 = arith.constant 0 : i32
    %c0_i32_2 = arith.constant 0 : i32
    %c0_i32_3 = arith.constant 0 : i32
    return %c0_i32, %c0_i32_0, %c0_i32_1, %c0_i32_2 : i32, i32, i32, i32
  }
  func.func @transform_3(%arg0: i32) -> (i32, i32, i32, i32) {
    %c0_i32 = arith.constant 0 : i32
    %c0_i32_0 = arith.constant 0 : i32
    %c0_i32_1 = arith.constant 0 : i32
    %c0_i32_2 = arith.constant 0 : i32
    %c0_i32_3 = arith.constant 0 : i32
    return %c0_i32, %c0_i32_0, %c0_i32_1, %c0_i32_2 : i32, i32, i32, i32
  }
}

</mosaic_0001>

<llo_original>
// kernel: conv_film_block.1
$region0: #{conv_film_block.1}
  #allocation0 [shape = 'u32[]', space=smem, size = 0x4, offset = 0x4, fixed_abs, tag = 'smem constant byte address 0x4 - core index']
  #allocation1 [shape = 'u32[144,128]{1,0:T(1,128)}', space=vmem, size = 0x12000, scoped, tag = 'internal scratch']
  %s0 = inlined_call_operand.vmem [shape: f32[512,37], index: 0, kind: input, shape index: {}]
  %s1 = inlined_call_operand.vmem [shape: f32[37,8], index: 1, kind: input, shape index: {}]
  %s2 = inlined_call_operand.vmem [shape: f32[2,4,8,8], index: 2, kind: input, shape index: {}]
  %s3 = inlined_call_operand.vmem [shape: f32[2,8,8,8], index: 3, kind: output, shape index: {}]
  %s4 = sld [smem:[#allocation0]]
  $region22: #{conv_film_block.1} parent=0
    _
  %s6 = ssub.s32 1, %s4
  %s7 = scalar_select 0, %s6, %s4
  // Predicated region
  $region2: #{conv_film_block.1} parent=0 // pred_check
    _
  $region3: #{conv_film_block.1} parent=0 // pred_check_branch
    %9 = sbr.rel (0) target = $region5
  $region4: #{conv_film_block.1} parent=0 // pred_region
    _
  $region5: #{conv_film_block.1} parent=0 // pred_fallthru
    _
  // Predicated region
  $region6: #{conv_film_block.1} parent=0 // pred_check
    _
  $region7: #{conv_film_block.1} parent=0 // pred_check_branch
    %11 = sbr.rel (0) target = $region9
  $region8: #{conv_film_block.1} parent=0 // pred_region
    _
  $region9: #{conv_film_block.1} parent=0 // pred_fallthru
    _
  // Predicated region
  $region10: #{conv_film_block.1} parent=0 // pred_check
    _
  $region11: #{conv_film_block.1} parent=0 // pred_check_branch
    %13 = sbr.rel (0) target = $region13
  $region12: #{conv_film_block.1} parent=0 // pred_region
    _
  $region13: #{conv_film_block.1} parent=0 // pred_fallthru
    _
  %v14 = vld [vmem:[%s0] sm:$0xff]
  %v15 = vld [vmem:[%s0 + $0x8] sm:$0xff]
  %v16 = vld [vmem:[%s0 + $0x10] sm:$0xff]
  %v17 = vld [vmem:[%s0 + $0x18] sm:$0xff]
  %v18 = vld [vmem:[%s0 + $0x20] sm:$0xff]
  %v19 = vld [vmem:[%s0 + $0x28] sm:$0xff]
  %v20 = vld [vmem:[%s0 + $0x30] sm:$0xff]
  %v21 = vld [vmem:[%s0 + $0x38] sm:$0xff]
  %v22 = vld [vmem:[%s0 + $0x40] sm:$0xff]
  %v23 = vld [vmem:[%s0 + $0x48] sm:$0xff]
  %v24 = vld [vmem:[%s0 + $0x50] sm:$0xff]
  %v25 = vld [vmem:[%s0 + $0x58] sm:$0xff]
  %v26 = vld [vmem:[%s0 + $0x60] sm:$0xff]
  %v27 = vld [vmem:[%s0 + $0x68] sm:$0xff]
  %v28 = vld [vmem:[%s0 + $0x70] sm:$0xff]
  %v29 = vld [vmem:[%s0 + $0x78] sm:$0xff]
  %v30 = vld [vmem:[%s0 + $0x80] sm:$0xff]
  %v31 = vld [vmem:[%s0 + $0x88] sm:$0xff]
  %v32 = vld [vmem:[%s0 + $0x90] sm:$0xff]
  %v33 = vld [vmem:[%s0 + $0x98] sm:$0xff]
  %v34 = vld [vmem:[%s0 + $0xa0] sm:$0xff]
  %v35 = vld [vmem:[%s0 + $0xa8] sm:$0xff]
  %v36 = vld [vmem:[%s0 + $0xb0] sm:$0xff]
  %v37 = vld [vmem:[%s0 + $0xb8] sm:$0xff]
  %v38 = vld [vmem:[%s0 + $0xc0] sm:$0xff]
  %v39 = vld [vmem:[%s0 + $0xc8] sm:$0xff]
  %v40 = vld [vmem:[%s0 + $0xd0] sm:$0xff]
  %v41 = vld [vmem:[%s0 + $0xd8] sm:$0xff]
  %v42 = vld [vmem:[%s0 + $0xe0] sm:$0xff]
  %v43 = vld [vmem:[%s0 + $0xe8] sm:$0xff]
  %v44 = vld [vmem:[%s0 + $0xf0] sm:$0xff]
  %v45 = vld [vmem:[%s0 + $0xf8] sm:$0xff]
  %v46 = vld [vmem:[%s0 + $0x100] sm:$0xff]
  %v47 = vld [vmem:[%s0 + $0x108] sm:$0xff]
  %v48 = vld [vmem:[%s0 + $0x110] sm:$0xff]
  %v49 = vld [vmem:[%s0 + $0x118] sm:$0xff]
  %v50 = vld [vmem:[%s0 + $0x120] sm:$0xff]
  %v51 = vld [vmem:[%s0 + $0x128] sm:$0xff]
  %v52 = vld [vmem:[%s0 + $0x130] sm:$0xff]
  %v53 = vld [vmem:[%s0 + $0x138] sm:$0xff]
  %v54 = vld [vmem:[%s0 + $0x140] sm:$0xff]
  %v55 = vld [vmem:[%s0 + $0x148] sm:$0xff]
  %v56 = vld [vmem:[%s0 + $0x150] sm:$0xff]
  %v57 = vld [vmem:[%s0 + $0x158] sm:$0xff]
  %v58 = vld [vmem:[%s0 + $0x160] sm:$0xff]
  %v59 = vld [vmem:[%s0 + $0x168] sm:$0xff]
  %v60 = vld [vmem:[%s0 + $0x170] sm:$0xff]
  %v61 = vld [vmem:[%s0 + $0x178] sm:$0xff]
  %v62 = vld [vmem:[%s0 + $0x180] sm:$0xff]
  %v63 = vld [vmem:[%s0 + $0x188] sm:$0xff]
  %v64 = vld [vmem:[%s0 + $0x190] sm:$0xff]
  %v65 = vld [vmem:[%s0 + $0x198] sm:$0xff]
  %v66 = vld [vmem:[%s0 + $0x1a0] sm:$0xff]
  %v67 = vld [vmem:[%s0 + $0x1a8] sm:$0xff]
  %v68 = vld [vmem:[%s0 + $0x1b0] sm:$0xff]
  %v69 = vld [vmem:[%s0 + $0x1b8] sm:$0xff]
  %v70 = vld [vmem:[%s0 + $0x1c0] sm:$0xff]
  %v71 = vld [vmem:[%s0 + $0x1c8] sm:$0xff]
  %v72 = vld [vmem:[%s0 + $0x1d0] sm:$0xff]
  %v73 = vld [vmem:[%s0 + $0x1d8] sm:$0xff]
  %v74 = vld [vmem:[%s0 + $0x1e0] sm:$0xff]
  %v75 = vld [vmem:[%s0 + $0x1e8] sm:$0xff]
  %v76 = vld [vmem:[%s0 + $0x1f0] sm:$0xff]
  %v77 = vld [vmem:[%s0 + $0x1f8] sm:$0xff]
  %v78 = vld [vmem:[%s1] sm:$0xff]
  %v79 = vld [vmem:[%s1 + $0x8] sm:$0xff]
  %v80 = vld [vmem:[%s1 + $0x10] sm:$0xff]
  %v81 = vld [vmem:[%s1 + $0x18] sm:$0xff]
  %v82 = vld [vmem:[%s1 + $0x20] sm:$0x1f]
  %vm83 = vcmask 302080
  %v85 = vsel %vm83, %v14, 0
  %v88 = vsel %vm83, %v15, 0
  %v91 = vsel %vm83, %v16, 0
  %v94 = vsel %vm83, %v17, 0
  %v97 = vsel %vm83, %v18, 0
  %v100 = vsel %vm83, %v19, 0
  %v103 = vsel %vm83, %v20, 0
  %v106 = vsel %vm83, %v21, 0
  %v109 = vsel %vm83, %v22, 0
  %v112 = vsel %vm83, %v23, 0
  %v115 = vsel %vm83, %v24, 0
  %v118 = vsel %vm83, %v25, 0
  %v121 = vsel %vm83, %v26, 0
  %v124 = vsel %vm83, %v27, 0
  %v127 = vsel %vm83, %v28, 0
  %v130 = vsel %vm83, %v29, 0
  %v133 = vsel %vm83, %v30, 0
  %v136 = vsel %vm83, %v31, 0
  %v139 = vsel %vm83, %v32, 0
  %v142 = vsel %vm83, %v33, 0
  %v145 = vsel %vm83, %v34, 0
  %v148 = vsel %vm83, %v35, 0
  %v151 = vsel %vm83, %v36, 0
  %v154 = vsel %vm83, %v37, 0
  %v157 = vsel %vm83, %v38, 0
  %v160 = vsel %vm83, %v39, 0
  %v163 = vsel %vm83, %v40, 0
  %v166 = vsel %vm83, %v41, 0
  %v169 = vsel %vm83, %v42, 0
  %v172 = vsel %vm83, %v43, 0
  %v175 = vsel %vm83, %v44, 0
  %v178 = vsel %vm83, %v45, 0
  %v181 = vsel %vm83, %v46, 0
  %v184 = vsel %vm83, %v47, 0
  %v187 = vsel %vm83, %v48, 0
  %v190 = vsel %vm83, %v49, 0
  %v193 = vsel %vm83, %v50, 0
  %v196 = vsel %vm83, %v51, 0
  %v199 = vsel %vm83, %v52, 0
  %v202 = vsel %vm83, %v53, 0
  %v205 = vsel %vm83, %v54, 0
  %v208 = vsel %vm83, %v55, 0
  %v211 = vsel %vm83, %v56, 0
  %v214 = vsel %vm83, %v57, 0
  %v217 = vsel %vm83, %v58, 0
  %v220 = vsel %vm83, %v59, 0
  %v223 = vsel %vm83, %v60, 0
  %v226 = vsel %vm83, %v61, 0
  %v229 = vsel %vm83, %v62, 0
  %v232 = vsel %vm83, %v63, 0
  %v235 = vsel %vm83, %v64, 0
  %v238 = vsel %vm83, %v65, 0
  %v241 = vsel %vm83, %v66, 0
  %v244 = vsel %vm83, %v67, 0
  %v247 = vsel %vm83, %v68, 0
  %v250 = vsel %vm83, %v69, 0
  %v253 = vsel %vm83, %v70, 0
  %v256 = vsel %vm83, %v71, 0
  %v259 = vsel %vm83, %v72, 0
  %v262 = vsel %vm83, %v73, 0
  %v265 = vsel %vm83, %v74, 0
  %v268 = vsel %vm83, %v75, 0
  %v271 = vsel %vm83, %v76, 0
  %v274 = vsel %vm83, %v77, 0
  %vm276 = vcmask 1044480
  %v278 = vsel %vm276, %v82, 0
  %280 = vmatprep.subr.mxu0 0.0
  %281 = vmatpush1.msra.mxu0 %v78
  %282 = vmatprep.subr.mxu0 0.0
  %283 = vmatpush1.msra.mxu0 %v79
  %284 = vmatprep.subr.mxu0 0.0
  %285 = vmatpush1.msra.mxu0 %v80
  %286 = vmatprep.subr.mxu0 0.0
  %287 = vmatpush1.msra.mxu0 %v81
  %288 = vmatprep.subr.mxu0 0.0
  %289 = vmatpush1.msra.mxu0 %v278
  %290 = vmatprep.subr.mxu0 0.0
  %291 = vmatpush1.msra.mxu0 0.0
  %292 = vmatprep.subr.mxu0 0.0
  %293 = vmatpush1.msra.mxu0 0.0
  %294 = vmatprep.subr.mxu0 0.0
  %295 = vmatpush1.msra.mxu0 0.0
  %296 = vmatprep.subr.mxu0 0.0
  %297 = vmatpush1.msra.mxu0 0.0
  %298 = vmatprep.subr.mxu0 0.0
  %299 = vmatpush1.msra.mxu0 0.0
  %300 = vmatprep.subr.mxu0 0.0
  %301 = vmatpush1.msra.mxu0 0.0
  %302 = vmatprep.subr.mxu0 0.0
  %303 = vmatpush1.msra.mxu0 0.0
  %304 = vmatprep.subr.mxu0 0.0
  %305 = vmatpush1.msra.mxu0 0.0
  %306 = vmatprep.subr.mxu0 0.0
  %307 = vmatpush1.msra.mxu0 0.0
  %308 = vmatprep.subr.mxu0 0.0
  %309 = vmatpush1.msra.mxu0 0.0
  %310 = vmatprep.subr.mxu0 0.0
  %311 = vmatpush1.msra.mxu0 0.0
  %312 = vmatprep.subr.mxu0 0.0
  %313 = vmatpush1.msra.mxu0 0.0
  %314 = vmatprep.subr.mxu0 0.0
  %315 = vmatpush1.msra.mxu0 0.0
  %316 = vmatprep.subr.mxu0 0.0
  %317 = vmatpush1.msra.mxu0 0.0
  %318 = vmatprep.subr.mxu0 0.0
  %319 = vmatpush1.msra.mxu0 0.0
  %320 = vmatprep.subr.mxu0 0.0
  %321 = vmatpush1.msra.mxu0 0.0
  %322 = vmatprep.subr.mxu0 0.0
  %323 = vmatpush1.msra.mxu0 0.0
  %324 = vmatprep.subr.mxu0 0.0
  %325 = vmatpush1.msra.mxu0 0.0
  %326 = vmatprep.subr.mxu0 0.0
  %327 = vmatpush1.msra.mxu0 0.0
  %328 = vmatprep.subr.mxu0 0.0
  %329 = vmatpush1.msra.mxu0 0.0
  %330 = vmatprep.subr.mxu0 0.0
  %331 = vmatpush1.msra.mxu0 0.0
  %332 = vmatprep.subr.mxu0 0.0
  %333 = vmatpush1.msra.mxu0 0.0
  %334 = vmatprep.subr.mxu0 0.0
  %335 = vmatpush1.msra.mxu0 0.0
  %336 = vmatprep.subr.mxu0 0.0
  %337 = vmatpush1.msra.mxu0 0.0
  %338 = vmatprep.subr.mxu0 0.0
  %339 = vmatpush1.msra.mxu0 0.0
  %340 = vmatprep.subr.mxu0 0.0
  %341 = vmatpush1.msra.mxu0 0.0
  %342 = vmatprep.subr.mxu0 0.0
  %343 = vmatpush1.msra.mxu0 0.0
  %344 = vmatprep.mubr.f32.mxu0 0.0
  %345 = vmatmul.mubr.f32.gmra.mrb[0].mxu0 %v85
  %v346 = vpop.f32.mrb[0].mxu0
  %v347 = vadd.f32 0.0, %v346
  %v348 = vpop.f32.mrb[0].mxu0
  %349 = vmatprep.mubr.f32.mxu0 0.0
  %350 = vmatmul.mubr.f32.gmra.mrb[0].mxu0 %v88
  %v351 = vpop.f32.mrb[0].mxu0
  %v352 = vadd.f32 0.0, %v351
  %v353 = vpop.f32.mrb[0].mxu0
  %354 = vmatprep.mubr.f32.mxu0 0.0
  %355 = vmatmul.mubr.f32.gmra.mrb[0].mxu0 %v91
  %v356 = vpop.f32.mrb[0].mxu0
  %v357 = vadd.f32 0.0, %v356
  %v358 = vpop.f32.mrb[0].mxu0
  %359 = vmatprep.mubr.f32.mxu0 0.0
  %360 = vmatmul.mubr.f32.gmra.mrb[0].mxu0 %v94
  %v361 = vpop.f32.mrb[0].mxu0
  %v362 = vadd.f32 0.0, %v361
  %v363 = vpop.f32.mrb[0].mxu0
  %364 = vmatprep.mubr.f32.mxu0 0.0
  %365 = vmatmul.mubr.f32.gmra.mrb[0].mxu0 %v97
  %v366 = vpop.f32.mrb[0].mxu0
  %v367 = vadd.f32 0.0, %v366
  %v368 = vpop.f32.mrb[0].mxu0
  %369 = vmatprep.mubr.f32.mxu0 0.0
  %370 = vmatmul.mubr.f32.gmra.mrb[0].mxu0 %v100
  %v371 = vpop.f32.mrb[0].mxu0
  %v372 = vadd.f32 0.0, %v371
  %v373 = vpop.f32.mrb[0].mxu0
  %374 = vmatprep.mubr.f32.mxu0 0.0
  %375 = vmatmul.mubr.f32.gmra.mrb[0].mxu0 %v103
  %v376 = vpop.f32.mrb[0].mxu0
  %v377 = vadd.f32 0.0, %v376
  %v378 = vpop.f32.mrb[0].mxu0
  %379 = vmatprep.mubr.f32.mxu0 0.0
  %380 = vmatmul.mubr.f32.gmra.mrb[0].mxu0 %v106
  %v381 = vpop.f32.mrb[0].mxu0
  %v382 = vadd.f32 0.0, %v381
  %v383 = vpop.f32.mrb[0].mxu0
  %384 = vmatprep.mubr.f32.mxu0 0.0
  %385 = vmatmul.mubr.f32.gmra.mrb[0].mxu0 %v109
  %v386 = vpop.f32.mrb[0].mxu0
  %v387 = vadd.f32 0.0, %v386
  %v388 = vpop.f32.mrb[0].mxu0
  %389 = vmatprep.mubr.f32.mxu0 0.0
  %390 = vmatmul.mubr.f32.gmra.mrb[0].mxu0 %v112
  %v391 = vpop.f32.mrb[0].mxu0
  %v392 = vadd.f32 0.0, %v391
  %v393 = vpop.f32.mrb[0].mxu0
  %394 = vmatprep.mubr.f32.mxu0 0.0
  %395 = vmatmul.mubr.f32.gmra.mrb[0].mxu0 %v115
  %v396 = vpop.f32.mrb[0].mxu0
  %v397 = vadd.f32 0.0, %v396
  %v398 = vpop.f32.mrb[0].mxu0
  %399 = vmatprep.mubr.f32.mxu0 0.0
  %400 = vmatmul.mubr.f32.gmra.mrb[0].mxu0 %v118
  %v401 = vpop.f32.mrb[0].mxu0
  %v402 = vadd.f32 0.0, %v401
  %v403 = vpop.f32.mrb[0].mxu0
  %404 = vmatprep.mubr.f32.mxu0 0.0
  %405 = vmatmul.mubr.f32.gmra.mrb[0].mxu0 %v121
  %v406 = vpop.f32.mrb[0].mxu0
  %v407 = vadd.f32 0.0, %v406
  %v408 = vpop.f32.mrb[0].mxu0
  %409 = vmatprep.mubr.f32.mxu0 0.0
  %410 = vmatmul.mubr.f32.gmra.mrb[0].mxu0 %v124
  %v411 = vpop.f32.mrb[0].mxu0
  %v412 = vadd.f32 0.0, %v411
  %v413 = vpop.f32.mrb[0].mxu0
  %414 = vmatprep.mubr.f32.mxu0 0.0
  %415 = vmatmul.mubr.f32.gmra.mrb[0].mxu0 %v127
  %v416 = vpop.f32.mrb[0].mxu0
  %v417 = vadd.f32 0.0, %v416
  %v418 = vpop.f32.mrb[0].mxu0
  %419 = vmatprep.mubr.f32.mxu0 0.0
  %420 = vmatmul.mubr.f32.gmra.mrb[0].mxu0 %v130
  %v421 = vpop.f32.mrb[0].mxu0
  %v422 = vadd.f32 0.0, %v421
  %v423 = vpop.f32.mrb[0].mxu0
  %424 = vmatprep.mubr.f32.mxu0 0.0
  %425 = vmatmul.mubr.f32.gmra.mrb[0].mxu0 %v133
  %v426 = vpop.f32.mrb[0].mxu0
  %v427 = vadd.f32 0.0, %v426
  %v428 = vpop.f32.mrb[0].mxu0
  %429 = vmatprep.mubr.f32.mxu0 0.0
  %430 = vmatmul.mubr.f32.gmra.mrb[0].mxu0 %v136
  %v431 = vpop.f32.mrb[0].mxu0
  %v432 = vadd.f32 0.0, %v431
  %v433 = vpop.f32.mrb[0].mxu0
  %434 = vmatprep.mubr.f32.mxu0 0.0
  %435 = vmatmul.mubr.f32.gmra.mrb[0].mxu0 %v139
  %v436 = vpop.f32.mrb[0].mxu0
  %v437 = vadd.f32 0.0, %v436
  %v438 = vpop.f32.mrb[0].mxu0
  %439 = vmatprep.mubr.f32.mxu0 0.0
  %440 = vmatmul.mubr.f32.gmra.mrb[0].mxu0 %v142
  %v441 = vpop.f32.mrb[0].mxu0
  %v442 = vadd.f32 0.0, %v441
  %v443 = vpop.f32.mrb[0].mxu0
  %444 = vmatprep.mubr.f32.mxu0 0.0
  %445 = vmatmul.mubr.f32.gmra.mrb[0].mxu0 %v145
  %v446 = vpop.f32.mrb[0].mxu0
  %v447 = vadd.f32 0.0, %v446
  %v448 = vpop.f32.mrb[0].mxu0
  %449 = vmatprep.mubr.f32.mxu0 0.0
  %450 = vmatmul.mubr.f32.gmra.mrb[0].mxu0 %v148
  %v451 = vpop.f32.mrb[0].mxu0
  %v452 = vadd.f32 0.0, %v451
  %v453 = vpop.f32.mrb[0].mxu0
  %454 = vmatprep.mubr.f32.mxu0 0.0
  %455 = vmatmul.mubr.f32.gmra.mrb[0].mxu0 %v151
  %v456 = vpop.f32.mrb[0].mxu0
  %v457 = vadd.f32 0.0, %v456
  %v458 = vpop.f32.mrb[0].mxu0
  %459 = vmatprep.mubr.f32.mxu0 0.0
  %460 = vmatmul.mubr.f32.gmra.mrb[0].mxu0 %v154
  %v461 = vpop.f32.mrb[0].mxu0
  %v462 = vadd.f32 0.0, %v461
  %v463 = vpop.f32.mrb[0].mxu0
  %464 = vmatprep.mubr.f32.mxu0 0.0
  %465 = vmatmul.mubr.f32.gmra.mrb[0].mxu0 %v157
  %v466 = vpop.f32.mrb[0].mxu0
  %v467 = vadd.f32 0.0, %v466
  %v468 = vpop.f32.mrb[0].mxu0
  %469 = vmatprep.mubr.f32.mxu0 0.0
  %470 = vmatmul.mubr.f32.gmra.mrb[0].mxu0 %v160
  %v471 = vpop.f32.mrb[0].mxu0
  %v472 = vadd.f32 0.0, %v471
  %v473 = vpop.f32.mrb[0].mxu0
  %474 = vmatprep.mubr.f32.mxu0 0.0
  %475 = vmatmul.mubr.f32.gmra.mrb[0].mxu0 %v163
  %v476 = vpop.f32.mrb[0].mxu0
  %v477 = vadd.f32 0.0, %v476
  %v478 = vpop.f32.mrb[0].mxu0
  %479 = vmatprep.mubr.f32.mxu0 0.0
  %480 = vmatmul.mubr.f32.gmra.mrb[0].mxu0 %v166
  %v481 = vpop.f32.mrb[0].mxu0
  %v482 = vadd.f32 0.0, %v481
  %v483 = vpop.f32.mrb[0].mxu0
  %484 = vmatprep.mubr.f32.mxu0 0.0
  %485 = vmatmul.mubr.f32.gmra.mrb[0].mxu0 %v169
  %v486 = vpop.f32.mrb[0].mxu0
  %v487 = vadd.f32 0.0, %v486
  %v488 = vpop.f32.mrb[0].mxu0
  %489 = vmatprep.mubr.f32.mxu0 0.0
  %490 = vmatmul.mubr.f32.gmra.mrb[0].mxu0 %v172
  %v491 = vpop.f32.mrb[0].mxu0
  %v492 = vadd.f32 0.0, %v491
  %v493 = vpop.f32.mrb[0].mxu0
  %494 = vmatprep.mubr.f32.mxu0 0.0
  %495 = vmatmul.mubr.f32.gmra.mrb[0].mxu0 %v175
  %v496 = vpop.f32.mrb[0].mxu0
  %v497 = vadd.f32 0.0, %v496
  %v498 = vpop.f32.mrb[0].mxu0
  %499 = vmatprep.mubr.f32.mxu0 0.0
  %500 = vmatmul.mubr.f32.gmra.mrb[0].mxu0 %v178
  %v501 = vpop.f32.mrb[0].mxu0
  %v502 = vadd.f32 0.0, %v501
  %v503 = vpop.f32.mrb[0].mxu0
  %504 = vmatprep.mubr.f32.mxu0 0.0
  %505 = vmatmul.mubr.f32.gmra.mrb[0].mxu0 %v181
  %v506 = vpop.f32.mrb[0].mxu0
  %v507 = vadd.f32 0.0, %v506
  %v508 = vpop.f32.mrb[0].mxu0
  %509 = vmatprep.mubr.f32.mxu0 0.0
  %510 = vmatmul.mubr.f32.gmra.mrb[0].mxu0 %v184
  %v511 = vpop.f32.mrb[0].mxu0
  %v512 = vadd.f32 0.0, %v511
  %v513 = vpop.f32.mrb[0].mxu0
  %514 = vmatprep.mubr.f32.mxu0 0.0
  %515 = vmatmul.mubr.f32.gmra.mrb[0].mxu0 %v187
  %v516 = vpop.f32.mrb[0].mxu0
  %v517 = vadd.f32 0.0, %v516
  %v518 = vpop.f32.mrb[0].mxu0
  %519 = vmatprep.mubr.f32.mxu0 0.0
  %520 = vmatmul.mubr.f32.gmra.mrb[0].mxu0 %v190
  %v521 = vpop.f32.mrb[0].mxu0
  %v522 = vadd.f32 0.0, %v521
  %v523 = vpop.f32.mrb[0].mxu0
  %524 = vmatprep.mubr.f32.mxu0 0.0
  %525 = vmatmul.mubr.f32.gmra.mrb[0].mxu0 %v193
  %v526 = vpop.f32.mrb[0].mxu0
  %v527 = vadd.f32 0.0, %v526
  %v528 = vpop.f32.mrb[0].mxu0
  %529 = vmatprep.mubr.f32.mxu0 0.0
  %530 = vmatmul.mubr.f32.gmra.mrb[0].mxu0 %v196
  %v531 = vpop.f32.mrb[0].mxu0
  %v532 = vadd.f32 0.0, %v531
  %v533 = vpop.f32.mrb[0].mxu0
  %534 = vmatprep.mubr.f32.mxu0 0.0
  %535 = vmatmul.mubr.f32.gmra.mrb[0].mxu0 %v199
  %v536 = vpop.f32.mrb[0].mxu0
  %v537 = vadd.f32 0.0, %v536
  %v538 = vpop.f32.mrb[0].mxu0
  %539 = vmatprep.mubr.f32.mxu0 0.0
  %540 = vmatmul.mubr.f32.gmra.mrb[0].mxu0 %v202
  %v541 = vpop.f32.mrb[0].mxu0
  %v542 = vadd.f32 0.0, %v541
  %v543 = vpop.f32.mrb[0].mxu0
  %544 = vmatprep.mubr.f32.mxu0 0.0
  %545 = vmatmul.mubr.f32.gmra.mrb[0].mxu0 %v205
  %v546 = vpop.f32.mrb[0].mxu0
  %v547 = vadd.f32 0.0, %v546
  %v548 = vpop.f32.mrb[0].mxu0
  %549 = vmatprep.mubr.f32.mxu0 0.0
  %550 = vmatmul.mubr.f32.gmra.mrb[0].mxu0 %v208
  %v551 = vpop.f32.mrb[0].mxu0
  %v552 = vadd.f32 0.0, %v551
  %v553 = vpop.f32.mrb[0].mxu0
  %554 = vmatprep.mubr.f32.mxu0 0.0
  %555 = vmatmul.mubr.f32.gmra.mrb[0].mxu0 %v211
  %v556 = vpop.f32.mrb[0].mxu0
  %v557 = vadd.f32 0.0, %v556
  %v558 = vpop.f32.mrb[0].mxu0
  %559 = vmatprep.mubr.f32.mxu0 0.0
  %560 = vmatmul.mubr.f32.gmra.mrb[0].mxu0 %v214
  %v561 = vpop.f32.mrb[0].mxu0
  %v562 = vadd.f32 0.0, %v561
  %v563 = vpop.f32.mrb[0].mxu0
  %564 = vmatprep.mubr.f32.mxu0 0.0
  %565 = vmatmul.mubr.f32.gmra.mrb[0].mxu0 %v217
  %v566 = vpop.f32.mrb[0].mxu0
  %v567 = vadd.f32 0.0, %v566
  %v568 = vpop.f32.mrb[0].mxu0
  %569 = vmatprep.mubr.f32.mxu0 0.0
  %570 = vmatmul.mubr.f32.gmra.mrb[0].mxu0 %v220
  %v571 = vpop.f32.mrb[0].mxu0
  %v572 = vadd.f32 0.0, %v571
  %v573 = vpop.f32.mrb[0].mxu0
  %574 = vmatprep.mubr.f32.mxu0 0.0
  %575 = vmatmul.mubr.f32.gmra.mrb[0].mxu0 %v223
  %v576 = vpop.f32.mrb[0].mxu0
  %v577 = vadd.f32 0.0, %v576
  %v578 = vpop.f32.mrb[0].mxu0
  %579 = vmatprep.mubr.f32.mxu0 0.0
  %580 = vmatmul.mubr.f32.gmra.mrb[0].mxu0 %v226
  %v581 = vpop.f32.mrb[0].mxu0
  %v582 = vadd.f32 0.0, %v581
  %v583 = vpop.f32.mrb[0].mxu0
  %584 = vmatprep.mubr.f32.mxu0 0.0
  %585 = vmatmul.mubr.f32.gmra.mrb[0].mxu0 %v229
  %v586 = vpop.f32.mrb[0].mxu0
  %v587 = vadd.f32 0.0, %v586
  %v588 = vpop.f32.mrb[0].mxu0
  %589 = vmatprep.mubr.f32.mxu0 0.0
  %590 = vmatmul.mubr.f32.gmra.mrb[0].mxu0 %v232
  %v591 = vpop.f32.mrb[0].mxu0
  %v592 = vadd.f32 0.0, %v591
  %v593 = vpop.f32.mrb[0].mxu0
  %594 = vmatprep.mubr.f32.mxu0 0.0
  %595 = vmatmul.mubr.f32.gmra.mrb[0].mxu0 %v235
  %v596 = vpop.f32.mrb[0].mxu0
  %v597 = vadd.f32 0.0, %v596
  %v598 = vpop.f32.mrb[0].mxu0
  %599 = vmatprep.mubr.f32.mxu0 0.0
  %600 = vmatmul.mubr.f32.gmra.mrb[0].mxu0 %v238
  %v601 = vpop.f32.mrb[0].mxu0
  %v602 = vadd.f32 0.0, %v601
  %v603 = vpop.f32.mrb[0].mxu0
  %604 = vmatprep.mubr.f32.mxu0 0.0
  %605 = vmatmul.mubr.f32.gmra.mrb[0].mxu0 %v241
  %v606 = vpop.f32.mrb[0].mxu0
  %v607 = vadd.f32 0.0, %v606
  %v608 = vpop.f32.mrb[0].mxu0
  %609 = vmatprep.mubr.f32.mxu0 0.0
  %610 = vmatmul.mubr.f32.gmra.mrb[0].mxu0 %v244
  %v611 = vpop.f32.mrb[0].mxu0
  %v612 = vadd.f32 0.0, %v611
  %v613 = vpop.f32.mrb[0].mxu0
  %614 = vmatprep.mubr.f32.mxu0 0.0
  %615 = vmatmul.mubr.f32.gmra.mrb[0].mxu0 %v247
  %v616 = vpop.f32.mrb[0].mxu0
  %v617 = vadd.f32 0.0, %v616
  %v618 = vpop.f32.mrb[0].mxu0
  %619 = vmatprep.mubr.f32.mxu0 0.0
  %620 = vmatmul.mubr.f32.gmra.mrb[0].mxu0 %v250
  %v621 = vpop.f32.mrb[0].mxu0
  %v622 = vadd.f32 0.0, %v621
  %v623 = vpop.f32.mrb[0].mxu0
  %624 = vmatprep.mubr.f32.mxu0 0.0
  %625 = vmatmul.mubr.f32.gmra.mrb[0].mxu0 %v253
  %v626 = vpop.f32.mrb[0].mxu0
  %v627 = vadd.f32 0.0, %v626
  %v628 = vpop.f32.mrb[0].mxu0
  %629 = vmatprep.mubr.f32.mxu0 0.0
  %630 = vmatmul.mubr.f32.gmra.mrb[0].mxu0 %v256
  %v631 = vpop.f32.mrb[0].mxu0
  %v632 = vadd.f32 0.0, %v631
  %v633 = vpop.f32.mrb[0].mxu0
  %634 = vmatprep.mubr.f32.mxu0 0.0
  %635 = vmatmul.mubr.f32.gmra.mrb[0].mxu0 %v259
  %v636 = vpop.f32.mrb[0].mxu0
  %v637 = vadd.f32 0.0, %v636
  %v638 = vpop.f32.mrb[0].mxu0
  %639 = vmatprep.mubr.f32.mxu0 0.0
  %640 = vmatmul.mubr.f32.gmra.mrb[0].mxu0 %v262
  %v641 = vpop.f32.mrb[0].mxu0
  %v642 = vadd.f32 0.0, %v641
  %v643 = vpop.f32.mrb[0].mxu0
  %644 = vmatprep.mubr.f32.mxu0 0.0
  %645 = vmatmul.mubr.f32.gmra.mrb[0].mxu0 %v265
  %v646 = vpop.f32.mrb[0].mxu0
  %v647 = vadd.f32 0.0, %v646
  %v648 = vpop.f32.mrb[0].mxu0
  %649 = vmatprep.mubr.f32.mxu0 0.0
  %650 = vmatmul.mubr.f32.gmra.mrb[0].mxu0 %v268
  %v651 = vpop.f32.mrb[0].mxu0
  %v652 = vadd.f32 0.0, %v651
  %v653 = vpop.f32.mrb[0].mxu0
  %654 = vmatprep.mubr.f32.mxu0 0.0
  %655 = vmatmul.mubr.f32.gmra.mrb[0].mxu0 %v271
  %v656 = vpop.f32.mrb[0].mxu0
  %v657 = vadd.f32 0.0, %v656
  %v658 = vpop.f32.mrb[0].mxu0
  %659 = vmatprep.mubr.f32.mxu0 0.0
  %660 = vmatmul.mubr.f32.gmra.mrb[0].mxu0 %v274
  %v661 = vpop.f32.mrb[0].mxu0
  %v662 = vadd.f32 0.0, %v661
  %v663 = vpop.f32.mrb[0].mxu0
  %664 = vdwg.mxu0
  %v665 = vmax.f32 %v347, 0.0
  %v666 = vmax.f32 %v352, 0.0
  %v667 = vmax.f32 %v357, 0.0
  %v668 = vmax.f32 %v362, 0.0
  %v669 = vmax.f32 %v367, 0.0
  %v670 = vmax.f32 %v372, 0.0
  %v671 = vmax.f32 %v377, 0.0
  %v672 = vmax.f32 %v382, 0.0
  %v673 = vmax.f32 %v387, 0.0
  %v674 = vmax.f32 %v392, 0.0
  %v675 = vmax.f32 %v397, 0.0
  %v676 = vmax.f32 %v402, 0.0
  %v677 = vmax.f32 %v407, 0.0
  %v678 = vmax.f32 %v412, 0.0
  %v679 = vmax.f32 %v417, 0.0
  %v680 = vmax.f32 %v422, 0.0
  %v681 = vmax.f32 %v427, 0.0
  %v682 = vmax.f32 %v432, 0.0
  %v683 = vmax.f32 %v437, 0.0
  %v684 = vmax.f32 %v442, 0.0
  %v685 = vmax.f32 %v447, 0.0
  %v686 = vmax.f32 %v452, 0.0
  %v687 = vmax.f32 %v457, 0.0
  %v688 = vmax.f32 %v462, 0.0
  %v689 = vmax.f32 %v467, 0.0
  %v690 = vmax.f32 %v472, 0.0
  %v691 = vmax.f32 %v477, 0.0
  %v692 = vmax.f32 %v482, 0.0
  %v693 = vmax.f32 %v487, 0.0
  %v694 = vmax.f32 %v492, 0.0
  %v695 = vmax.f32 %v497, 0.0
  %v696 = vmax.f32 %v502, 0.0
  %v697 = vmax.f32 %v507, 0.0
  %v698 = vmax.f32 %v512, 0.0
  %v699 = vmax.f32 %v517, 0.0
  %v700 = vmax.f32 %v522, 0.0
  %v701 = vmax.f32 %v527, 0.0
  %v702 = vmax.f32 %v532, 0.0
  %v703 = vmax.f32 %v537, 0.0
  %v704 = vmax.f32 %v542, 0.0
  %v705 = vmax.f32 %v547, 0.0
  %v706 = vmax.f32 %v552, 0.0
  %v707 = vmax.f32 %v557, 0.0
  %v708 = vmax.f32 %v562, 0.0
  %v709 = vmax.f32 %v567, 0.0
  %v710 = vmax.f32 %v572, 0.0
  %v711 = vmax.f32 %v577, 0.0
  %v712 = vmax.f32 %v582, 0.0
  %v713 = vmax.f32 %v587, 0.0
  %v714 = vmax.f32 %v592, 0.0
  %v715 = vmax.f32 %v597, 0.0
  %v716 = vmax.f32 %v602, 0.0
  %v717 = vmax.f32 %v607, 0.0
  %v718 = vmax.f32 %v612, 0.0
  %v719 = vmax.f32 %v617, 0.0
  %v720 = vmax.f32 %v622, 0.0
  %v721 = vmax.f32 %v627, 0.0
  %v722 = vmax.f32 %v632, 0.0
  %v723 = vmax.f32 %v637, 0.0
  %v724 = vmax.f32 %v642, 0.0
  %v725 = vmax.f32 %v647, 0.0
  %v726 = vmax.f32 %v652, 0.0
  %v727 = vmax.f32 %v657, 0.0
  %v728 = vmax.f32 %v662, 0.0
  %v729 = vld [vmem:[%s2] sm:$0xff]
  %v730 = vld [vmem:[%s2 + $0x8] sm:$0xff]
  %v731 = vld [vmem:[%s2 + $0x10] sm:$0xff]
  %v732 = vld [vmem:[%s2 + $0x18] sm:$0xff]
  %v733 = vmul.f32 %v665, %v729
  %v734 = vmul.f32 %v666, %v729
  %v735 = vmul.f32 %v667, %v729
  %v736 = vmul.f32 %v668, %v729
  %v737 = vmul.f32 %v669, %v729
  %v738 = vmul.f32 %v670, %v729
  %v739 = vmul.f32 %v671, %v729
  %v740 = vmul.f32 %v672, %v729
  %v741 = vmul.f32 %v673, %v729
  %v742 = vmul.f32 %v674, %v729
  %v743 = vmul.f32 %v675, %v729
  %v744 = vmul.f32 %v676, %v729
  %v745 = vmul.f32 %v677, %v729
  %v746 = vmul.f32 %v678, %v729
  %v747 = vmul.f32 %v679, %v729
  %v748 = vmul.f32 %v680, %v729
  %v749 = vmul.f32 %v681, %v730
  %v750 = vmul.f32 %v682, %v730
  %v751 = vmul.f32 %v683, %v730
  %v752 = vmul.f32 %v684, %v730
  %v753 = vmul.f32 %v685, %v730
  %v754 = vmul.f32 %v686, %v730
  %v755 = vmul.f32 %v687, %v730
  %v756 = vmul.f32 %v688, %v730
  %v757 = vmul.f32 %v689, %v730
  %v758 = vmul.f32 %v690, %v730
  %v759 = vmul.f32 %v691, %v730
  %v760 = vmul.f32 %v692, %v730
  %v761 = vmul.f32 %v693, %v730
  %v762 = vmul.f32 %v694, %v730
  %v763 = vmul.f32 %v695, %v730
  %v764 = vmul.f32 %v696, %v730
  %v765 = vmul.f32 %v697, %v731
  %v766 = vmul.f32 %v698, %v731
  %v767 = vmul.f32 %v699, %v731
  %v768 = vmul.f32 %v700, %v731
  %v769 = vmul.f32 %v701, %v731
  %v770 = vmul.f32 %v702, %v731
  %v771 = vmul.f32 %v703, %v731
  %v772 = vmul.f32 %v704, %v731
  %v773 = vmul.f32 %v705, %v731
  %v774 = vmul.f32 %v706, %v731
  %v775 = vmul.f32 %v707, %v731
  %v776 = vmul.f32 %v708, %v731
  %v777 = vmul.f32 %v709, %v731
  %v778 = vmul.f32 %v710, %v731
  %v779 = vmul.f32 %v711, %v731
  %v780 = vmul.f32 %v712, %v731
  %v781 = vmul.f32 %v713, %v732
  %v782 = vmul.f32 %v714, %v732
  %v783 = vmul.f32 %v715, %v732
  %v784 = vmul.f32 %v716, %v732
  %v785 = vmul.f32 %v717, %v732
  %v786 = vmul.f32 %v718, %v732
  %v787 = vmul.f32 %v719, %v732
  %v788 = vmul.f32 %v720, %v732
  %v789 = vmul.f32 %v721, %v732
  %v790 = vmul.f32 %v722, %v732
  %v791 = vmul.f32 %v723, %v732
  %v792 = vmul.f32 %v724, %v732
  %v793 = vmul.f32 %v725, %v732
  %v794 = vmul.f32 %v726, %v732
  %v795 = vmul.f32 %v727, %v732
  %v796 = vmul.f32 %v728, %v732
  %s797 = scalar_lea.vmem %s2, 32
  %v798 = vld [vmem:[%s797] sm:$0xff]
  %v799 = vld [vmem:[%s797 + $0x8] sm:$0xff]
  %v800 = vld [vmem:[%s797 + $0x10] sm:$0xff]
  %v801 = vld [vmem:[%s797 + $0x18] sm:$0xff]
  %v802 = vadd.f32 %v733, %v798
  %v803 = vadd.f32 %v734, %v798
  %v804 = vadd.f32 %v735, %v798
  %v805 = vadd.f32 %v736, %v798
  %v806 = vadd.f32 %v737, %v798
  %v807 = vadd.f32 %v738, %v798
  %v808 = vadd.f32 %v739, %v798
  %v809 = vadd.f32 %v740, %v798
  %v810 = vadd.f32 %v741, %v798
  %v811 = vadd.f32 %v742, %v798
  %v812 = vadd.f32 %v743, %v798
  %v813 = vadd.f32 %v744, %v798
  %v814 = vadd.f32 %v745, %v798
  %v815 = vadd.f32 %v746, %v798
  %v816 = vadd.f32 %v747, %v798
  %v817 = vadd.f32 %v748, %v798
  %v818 = vadd.f32 %v749, %v799
  %v819 = vadd.f32 %v750, %v799
  %v820 = vadd.f32 %v751, %v799
  %v821 = vadd.f32 %v752, %v799
  %v822 = vadd.f32 %v753, %v799
  %v823 = vadd.f32 %v754, %v799
  %v824 = vadd.f32 %v755, %v799
  %v825 = vadd.f32 %v756, %v799
  %v826 = vadd.f32 %v757, %v799
  %v827 = vadd.f32 %v758, %v799
  %v828 = vadd.f32 %v759, %v799
  %v829 = vadd.f32 %v760, %v799
  %v830 = vadd.f32 %v761, %v799
  %v831 = vadd.f32 %v762, %v799
  %v832 = vadd.f32 %v763, %v799
  %v833 = vadd.f32 %v764, %v799
  %v834 = vadd.f32 %v765, %v800
  %v835 = vadd.f32 %v766, %v800
  %v836 = vadd.f32 %v767, %v800
  %v837 = vadd.f32 %v768, %v800
  %v838 = vadd.f32 %v769, %v800
  %v839 = vadd.f32 %v770, %v800
  %v840 = vadd.f32 %v771, %v800
  %v841 = vadd.f32 %v772, %v800
  %v842 = vadd.f32 %v773, %v800
  %v843 = vadd.f32 %v774, %v800
  %v844 = vadd.f32 %v775, %v800
  %v845 = vadd.f32 %v776, %v800
  %v846 = vadd.f32 %v777, %v800
  %v847 = vadd.f32 %v778, %v800
  %v848 = vadd.f32 %v779, %v800
  %v849 = vadd.f32 %v780, %v800
  %v850 = vadd.f32 %v781, %v801
  %v851 = vadd.f32 %v782, %v801
  %v852 = vadd.f32 %v783, %v801
  %v853 = vadd.f32 %v784, %v801
  %v854 = vadd.f32 %v785, %v801
  %v855 = vadd.f32 %v786, %v801
  %v856 = vadd.f32 %v787, %v801
  %v857 = vadd.f32 %v788, %v801
  %v858 = vadd.f32 %v789, %v801
  %v859 = vadd.f32 %v790, %v801
  %v860 = vadd.f32 %v791, %v801
  %v861 = vadd.f32 %v792, %v801
  %v862 = vadd.f32 %v793, %v801
  %v863 = vadd.f32 %v794, %v801
  %v864 = vadd.f32 %v795, %v801
  %v865 = vadd.f32 %v796, %v801
  %vm866 = vcmask 64512
  %v867 = vsel %vm866, %v802, -inf
  %v868 = vsel %vm866, %v818, -inf
  %v869 = vmax.f32 %v867, %v868
  %v870 = vsel %vm866, %v834, -inf
  %v871 = vmax.f32 %v869, %v870
  %v872 = vsel %vm866, %v850, -inf
  %v873 = vmax.f32 %v871, %v872
  %v874 = vsel %vm866, %v803, -inf
  %v875 = vsel %vm866, %v819, -inf
  %v876 = vmax.f32 %v874, %v875
  %v877 = vsel %vm866, %v835, -inf
  %v878 = vmax.f32 %v876, %v877
  %v879 = vsel %vm866, %v851, -inf
  %v880 = vmax.f32 %v878, %v879
  %v881 = vsel %vm866, %v804, -inf
  %v882 = vsel %vm866, %v820, -inf
  %v883 = vmax.f32 %v881, %v882
  %v884 = vsel %vm866, %v836, -inf
  %v885 = vmax.f32 %v883, %v884
  %v886 = vsel %vm866, %v852, -inf
  %v887 = vmax.f32 %v885, %v886
  %v888 = vsel %vm866, %v805, -inf
  %v889 = vsel %vm866, %v821, -inf
  %v890 = vmax.f32 %v888, %v889
  %v891 = vsel %vm866, %v837, -inf
  %v892 = vmax.f32 %v890, %v891
  %v893 = vsel %vm866, %v853, -inf
  %v894 = vmax.f32 %v892, %v893
  %v895 = vsel %vm866, %v806, -inf
  %v896 = vsel %vm866, %v822, -inf
  %v897 = vmax.f32 %v895, %v896
  %v898 = vsel %vm866, %v838, -inf
  %v899 = vmax.f32 %v897, %v898
  %v900 = vsel %vm866, %v854, -inf
  %v901 = vmax.f32 %v899, %v900
  %v902 = vsel %vm866, %v807, -inf
  %v903 = vsel %vm866, %v823, -inf
  %v904 = vmax.f32 %v902, %v903
  %v905 = vsel %vm866, %v839, -inf
  %v906 = vmax.f32 %v904, %v905
  %v907 = vsel %vm866, %v855, -inf
  %v908 = vmax.f32 %v906, %v907
  %v909 = vsel %vm866, %v808, -inf
  %v910 = vsel %vm866, %v824, -inf
  %v911 = vmax.f32 %v909, %v910
  %v912 = vsel %vm866, %v840, -inf
  %v913 = vmax.f32 %v911, %v912
  %v914 = vsel %vm866, %v856, -inf
  %v915 = vmax.f32 %v913, %v914
  %v916 = vsel %vm866, %v809, -inf
  %v917 = vsel %vm866, %v825, -inf
  %v918 = vmax.f32 %v916, %v917
  %v919 = vsel %vm866, %v841, -inf
  %v920 = vmax.f32 %v918, %v919
  %v921 = vsel %vm866, %v857, -inf
  %v922 = vmax.f32 %v920, %v921
  %v923 = vsel %vm866, %v810, -inf
  %v924 = vsel %vm866, %v826, -inf
  %v925 = vmax.f32 %v923, %v924
  %v926 = vsel %vm866, %v842, -inf
  %v927 = vmax.f32 %v925, %v926
  %v928 = vsel %vm866, %v858, -inf
  %v929 = vmax.f32 %v927, %v928
  %v930 = vsel %vm866, %v811, -inf
  %v931 = vsel %vm866, %v827, -inf
  %v932 = vmax.f32 %v930, %v931
  %v933 = vsel %vm866, %v843, -inf
  %v934 = vmax.f32 %v932, %v933
  %v935 = vsel %vm866, %v859, -inf
  %v936 = vmax.f32 %v934, %v935
  %v937 = vsel %vm866, %v812, -inf
  %v938 = vsel %vm866, %v828, -inf
  %v939 = vmax.f32 %v937, %v938
  %v940 = vsel %vm866, %v844, -inf
  %v941 = vmax.f32 %v939, %v940
  %v942 = vsel %vm866, %v860, -inf
  %v943 = vmax.f32 %v941, %v942
  %v944 = vsel %vm866, %v813, -inf
  %v945 = vsel %vm866, %v829, -inf
  %v946 = vmax.f32 %v944, %v945
  %v947 = vsel %vm866, %v845, -inf
  %v948 = vmax.f32 %v946, %v947
  %v949 = vsel %vm866, %v861, -inf
  %v950 = vmax.f32 %v948, %v949
  %v951 = vsel %vm866, %v814, -inf
  %v952 = vsel %vm866, %v830, -inf
  %v953 = vmax.f32 %v951, %v952
  %v954 = vsel %vm866, %v846, -inf
  %v955 = vmax.f32 %v953, %v954
  %v956 = vsel %vm866, %v862, -inf
  %v957 = vmax.f32 %v955, %v956
  %v958 = vsel %vm866, %v815, -inf
  %v959 = vsel %vm866, %v831, -inf
  %v960 = vmax.f32 %v958, %v959
  %v961 = vsel %vm866, %v847, -inf
  %v962 = vmax.f32 %v960, %v961
  %v963 = vsel %vm866, %v863, -inf
  %v964 = vmax.f32 %v962, %v963
  %v965 = vsel %vm866, %v816, -inf
  %v966 = vsel %vm866, %v832, -inf
  %v967 = vmax.f32 %v965, %v966
  %v968 = vsel %vm866, %v848, -inf
  %v969 = vmax.f32 %v967, %v968
  %v970 = vsel %vm866, %v864, -inf
  %v971 = vmax.f32 %v969, %v970
  %v972 = vsel %vm866, %v817, -inf
  %v973 = vsel %vm866, %v833, -inf
  %v974 = vmax.f32 %v972, %v973
  %v975 = vsel %vm866, %v849, -inf
  %v976 = vmax.f32 %v974, %v975
  %v977 = vsel %vm866, %v865, -inf
  %v978 = vmax.f32 %v976, %v977
  %v979 = vsel %vm866, %v873, 0.0
  %v980 = vsel %vm866, %v880, 0.0
  %v981 = vadd.f32 %v979, %v980
  %v982 = vsel %vm866, %v887, 0.0
  %v983 = vadd.f32 %v981, %v982
  %v984 = vsel %vm866, %v894, 0.0
  %v985 = vadd.f32 %v983, %v984
  %v986 = vsel %vm866, %v901, 0.0
  %v987 = vadd.f32 %v985, %v986
  %v988 = vsel %vm866, %v908, 0.0
  %v989 = vadd.f32 %v987, %v988
  %v990 = vsel %vm866, %v915, 0.0
  %v991 = vadd.f32 %v989, %v990
  %v992 = vsel %vm866, %v922, 0.0
  %v993 = vadd.f32 %v991, %v992
  %v994 = vrot.slane %v993, 4
  %v995 = vadd.f32 %v993, %v994
  %v996 = vrot.slane %v995, 2
  %v997 = vadd.f32 %v995, %v996
  %v998 = vrot.slane %v997, 1
  %v999 = vadd.f32 %v997, %v998
  %v1000 = vsel %vm866, %v929, 0.0
  %v1001 = vsel %vm866, %v936, 0.0
  %v1002 = vadd.f32 %v1000, %v1001
  %v1003 = vsel %vm866, %v943, 0.0
  %v1004 = vadd.f32 %v1002, %v1003
  %v1005 = vsel %vm866, %v950, 0.0
  %v1006 = vadd.f32 %v1004, %v1005
  %v1007 = vsel %vm866, %v957, 0.0
  %v1008 = vadd.f32 %v1006, %v1007
  %v1009 = vsel %vm866, %v964, 0.0
  %v1010 = vadd.f32 %v1008, %v1009
  %v1011 = vsel %vm866, %v971, 0.0
  %v1012 = vadd.f32 %v1010, %v1011
  %v1013 = vsel %vm866, %v978, 0.0
  %v1014 = vadd.f32 %v1012, %v1013
  %v1015 = vrot.slane %v1014, 4
  %v1016 = vadd.f32 %v1014, %v1015
  %v1017 = vrot.slane %v1016, 2
  %v1018 = vadd.f32 %v1016, %v1017
  %v1019 = vrot.slane %v1018, 1
  %v1020 = vadd.f32 %v1018, %v1019
  %v1021 = vrcp.pop 64.0
  %v1022 = vmul.f32 %v999, %v1021
  %v1023 = vmul.f32 %v1020, %v1021
  %v1024 = vmul.f32 %v873, %v873
  %v1025 = vmul.f32 %v880, %v880
  %v1026 = vmul.f32 %v887, %v887
  %v1027 = vmul.f32 %v894, %v894
  %v1028 = vmul.f32 %v901, %v901
  %v1029 = vmul.f32 %v908, %v908
  %v1030 = vmul.f32 %v915, %v915
  %v1031 = vmul.f32 %v922, %v922
  %v1032 = vmul.f32 %v929, %v929
  %v1033 = vmul.f32 %v936, %v936
  %v1034 = vmul.f32 %v943, %v943
  %v1035 = vmul.f32 %v950, %v950
  %v1036 = vmul.f32 %v957, %v957
  %v1037 = vmul.f32 %v964, %v964
  %v1038 = vmul.f32 %v971, %v971
  %v1039 = vmul.f32 %v978, %v978
  %v1040 = vsel %vm866, %v1024, 0.0
  %v1041 = vsel %vm866, %v1025, 0.0
  %v1042 = vadd.f32 %v1040, %v1041
  %v1043 = vsel %vm866, %v1026, 0.0
  %v1044 = vadd.f32 %v1042, %v1043
  %v1045 = vsel %vm866, %v1027, 0.0
  %v1046 = vadd.f32 %v1044, %v1045
  %v1047 = vsel %vm866, %v1028, 0.0
  %v1048 = vadd.f32 %v1046, %v1047
  %v1049 = vsel %vm866, %v1029, 0.0
  %v1050 = vadd.f32 %v1048, %v1049
  %v1051 = vsel %vm866, %v1030, 0.0
  %v1052 = vadd.f32 %v1050, %v1051
  %v1053 = vsel %vm866, %v1031, 0.0
  %v1054 = vadd.f32 %v1052, %v1053
  %v1055 = vrot.slane %v1054, 4
  %v1056 = vadd.f32 %v1054, %v1055
  %v1057 = vrot.slane %v1056, 2
  %v1058 = vadd.f32 %v1056, %v1057
  %v1059 = vrot.slane %v1058, 1
  %v1060 = vadd.f32 %v1058, %v1059
  %v1061 = vsel %vm866, %v1032, 0.0
  %v1062 = vsel %vm866, %v1033, 0.0
  %v1063 = vadd.f32 %v1061, %v1062
  %v1064 = vsel %vm866, %v1034, 0.0
  %v1065 = vadd.f32 %v1063, %v1064
  %v1066 = vsel %vm866, %v1035, 0.0
  %v1067 = vadd.f32 %v1065, %v1066
  %v1068 = vsel %vm866, %v1036, 0.0
  %v1069 = vadd.f32 %v1067, %v1068
  %v1070 = vsel %vm866, %v1037, 0.0
  %v1071 = vadd.f32 %v1069, %v1070
  %v1072 = vsel %vm866, %v1038, 0.0
  %v1073 = vadd.f32 %v1071, %v1072
  %v1074 = vsel %vm866, %v1039, 0.0
  %v1075 = vadd.f32 %v1073, %v1074
  %v1076 = vrot.slane %v1075, 4
  %v1077 = vadd.f32 %v1075, %v1076
  %v1078 = vrot.slane %v1077, 2
  %v1079 = vadd.f32 %v1077, %v1078
  %v1080 = vrot.slane %v1079, 1
  %v1081 = vadd.f32 %v1079, %v1080
  %v1082 = vmul.f32 %v1060, %v1021
  %v1083 = vmul.f32 %v1081, %v1021
  %v1084 = vmul.f32 %v1022, %v1022
  %v1085 = vmul.f32 %v1023, %v1023
  %v1086 = vsub.f32 %v1082, %v1084
  %v1087 = vsub.f32 %v1083, %v1085
  %v1088 = vsub.f32 %v873, %v1022
  %v1089 = vsub.f32 %v880, %v1022
  %v1090 = vsub.f32 %v887, %v1022
  %v1091 = vsub.f32 %v894, %v1022
  %v1092 = vsub.f32 %v901, %v1022
  %v1093 = vsub.f32 %v908, %v1022
  %v1094 = vsub.f32 %v915, %v1022
  %v1095 = vsub.f32 %v922, %v1022
  %v1096 = vsub.f32 %v929, %v1023
  %v1097 = vsub.f32 %v936, %v1023
  %v1098 = vsub.f32 %v943, %v1023
  %v1099 = vsub.f32 %v950, %v1023
  %v1100 = vsub.f32 %v957, %v1023
  %v1101 = vsub.f32 %v964, %v1023
  %v1102 = vsub.f32 %v971, %v1023
  %v1103 = vsub.f32 %v978, %v1023
  %v1104 = vadd.f32 %v1086, 1e-05
  %v1105 = vadd.f32 %v1087, 1e-05
  %v1106 = vrsqrt.pop %v1104
  %v1107 = vrsqrt.pop %v1105
  %v1108 = vmul.f32 %v1088, %v1106
  %v1109 = vmul.f32 %v1089, %v1106
  %v1110 = vmul.f32 %v1090, %v1106
  %v1111 = vmul.f32 %v1091, %v1106
  %v1112 = vmul.f32 %v1092, %v1106
  %v1113 = vmul.f32 %v1093, %v1106
  %v1114 = vmul.f32 %v1094, %v1106
  %v1115 = vmul.f32 %v1095, %v1106
  %v1116 = vmul.f32 %v1096, %v1107
  %v1117 = vmul.f32 %v1097, %v1107
  %v1118 = vmul.f32 %v1098, %v1107
  %v1119 = vmul.f32 %v1099, %v1107
  %v1120 = vmul.f32 %v1100, %v1107
  %v1121 = vmul.f32 %v1101, %v1107
  %v1122 = vmul.f32 %v1102, %v1107
  %v1123 = vmul.f32 %v1103, %v1107
  %1124 = vst.msk [vmem:[%s3] sm:$0xff] %vm866, %v1108
  %1125 = vst.msk [vmem:[%s3 + $0x8] sm:$0xff] %vm866, %v1109
  %1126 = vst.msk [vmem:[%s3 + $0x10] sm:$0xff] %vm866, %v1110
  %1127 = vst.msk [vmem:[%s3 + $0x18] sm:$0xff] %vm866, %v1111
  %1128 = vst.msk [vmem:[%s3 + $0x20] sm:$0xff] %vm866, %v1112
  %1129 = vst.msk [vmem:[%s3 + $0x28] sm:$0xff] %vm866, %v1113
  %1130 = vst.msk [vmem:[%s3 + $0x30] sm:$0xff] %vm866, %v1114
  %1131 = vst.msk [vmem:[%s3 + $0x38] sm:$0xff] %vm866, %v1115
  %1132 = vst.msk [vmem:[%s3 + $0x40] sm:$0xff] %vm866, %v1116
  %1133 = vst.msk [vmem:[%s3 + $0x48] sm:$0xff] %vm866, %v1117
  %1134 = vst.msk [vmem:[%s3 + $0x50] sm:$0xff] %vm866, %v1118
  %1135 = vst.msk [vmem:[%s3 + $0x58] sm:$0xff] %vm866, %v1119
  %1136 = vst.msk [vmem:[%s3 + $0x60] sm:$0xff] %vm866, %v1120
  %1137 = vst.msk [vmem:[%s3 + $0x68] sm:$0xff] %vm866, %v1121
  %1138 = vst.msk [vmem:[%s3 + $0x70] sm:$0xff] %vm866, %v1122
  %1139 = vst.msk [vmem:[%s3 + $0x78] sm:$0xff] %vm866, %v1123
  // Predicated region
  $region14: #{conv_film_block.1} parent=0 // pred_check
    _
  $region15: #{conv_film_block.1} parent=0 // pred_check_branch
    %1141 = sbr.rel (0) target = $region17
  $region16: #{conv_film_block.1} parent=0 // pred_region
    _
  $region17: #{conv_film_block.1} parent=0 // pred_fallthru
    _
  // Predicated region
  $region18: #{conv_film_block.1} parent=0 // pred_check
    _
  $region19: #{conv_film_block.1} parent=0 // pred_check_branch
    %1143 = sbr.rel (0) target = $region21
  $region20: #{conv_film_block.1} parent=0 // pred_region
    _
  $region21: #{conv_film_block.1} parent=0 // pred_fallthru
    _

</llo_original>
